<compile_context>
chip_gen: v7x
topology: tpu7x:2x2x1
jax: 0.10.0
libtpu: 0.0.40
codegen_flags: <defaults>
</compile_context>

<pallas_src>
import functools

import jax
import jax.numpy as jnp
from jax import lax
from jax.experimental import pallas as pl
from jax.experimental.pallas import tpu as pltpu


def _lightda_kernel(n_rest1, n_rest2, tb, n, split, x_ref, p0_ref, *refs):
    """One grid step == `tb` batch elements.

    refs = [P1_1, ..., P1_{L1-1}, P2_1, ..., P2_{L2-1}, out_ref]
    where each P is a packed [W^T; b] buffer of shape (c_in + 1, c_out) and
    p0_ref is the fused first layer of both branches (lane-split at `split`).
    """
    p1_refs = refs[:n_rest1]
    p2_refs = refs[n_rest1:n_rest1 + n_rest2]
    out_ref = refs[n_rest1 + n_rest2]

    if tb == 1:
        h = x_ref[0]                                      # (N, C)
    else:
        # n % 8 == 0 is guaranteed by the wrapper, so this merge is tile-aligned.
        h = x_ref[...].reshape(tb * n, x_ref.shape[-1])   # (TB*N, C)

    def layer(h_in, p_ref):
        cin = p_ref.shape[0] - 1
        w = p_ref[:cin, :]                                # (c_in, c_out), pre-transposed
        b = p_ref[cin:cin + 1, :]                         # (1, c_out)
        y = jnp.dot(h_in.astype(w.dtype), w, preferred_element_type=jnp.float32)
        y = y + b.astype(jnp.float32)
        return jnp.maximum(y, 0.0)                        # Conv1d(k=1)+BN(folded)+ReLU

    # Fused first layer of both branches (one matmul), then static lane split.
    h0 = layer(h, p0_ref)                                 # (M, H1_0 + H2_0)
    h1 = h0[:, :split]
    h2 = h0[:, split:]
    for p in p1_refs:
        h1 = layer(h1, p)                                 # (M, H1)
    for p in p2_refs:
        h2 = layer(h2, p)                                 # (M, H2)

    # Per-batch: softmax over N (PyTorch Softmax(dim=-1) on (B, H1, N)), then
    # bmm(x1, x2^T) == contraction over N -- no transposes materialized.
    # TB is small by construction, so this static unroll stays cheap; each
    # iteration is one XLU reduce pair, one EUP exp, one VPU scale, one matmul.
    for b_idx in range(tb):
        a = h1[b_idx * n:(b_idx + 1) * n, :]              # (N, H1)
        v = h2[b_idx * n:(b_idx + 1) * n, :]              # (N, H2)
        m = jnp.max(a, axis=0, keepdims=True)             # (1, H1)   XLU
        e = jnp.exp(a - m)                                 # (N, H1)   EUP
        s = jnp.sum(e, axis=0, keepdims=True)              # (1, H1)   XLU
        r = pl.reciprocal(s, approx=True)                  # EUP slot
        r = r * (2.0 - s * r)                              # one Newton step -> f32 accuracy
        sm = e * r                                          # softmax over N, (N, H1)
        out_ref[b_idx] = lax.dot_general(
            sm, v, (((0,), (0,)), ((), ())),
            preferred_element_type=jnp.float32)            # (H1, H2)


def _choose_tb(batch, n, target_m=512):
    """Batches per grid step: aim M = TB*N ~ target_m, keep >= 2 grid steps."""
    if batch <= 1 or n % 8 != 0:
        return 1
    tb = max(1, target_m // n)
    tb = min(tb, max(1, batch // 2))      # keep the grid >= 2 (pipelining / 2 TCs on v7x)
    while batch % tb != 0:
        tb -= 1
    return max(tb, 1)


def light_da_forward(x, mlp1_params, mlp2_params, *, param_dtype=jnp.float32):
    """x: (B, N, C_in); params: lists of BN-folded (W (c_out, c_in), b (c_out,))."""
    B, N, C = x.shape
    H1 = mlp1_params[-1][0].shape[0]
    H2 = mlp2_params[-1][0].shape[0]

    # --- host-side parameter packing (done once, free under jit) -------------
    def pack(w, bias):                        # -> (c_in + 1, c_out) = [W^T; b]
        return jnp.concatenate([w.T, bias[None, :]], axis=0).astype(param_dtype)

    (w1_0, b1_0), (w2_0, b2_0) = mlp1_params[0], mlp2_params[0]
    split = w1_0.shape[0]
    p0 = jnp.concatenate(
        [jnp.concatenate([w1_0.T, w2_0.T], axis=1),
         jnp.concatenate([b1_0, b2_0])[None, :]], axis=0).astype(param_dtype)
    rest1 = [pack(w, b) for (w, b) in mlp1_params[1:]]
    rest2 = [pack(w, b) for (w, b) in mlp2_params[1:]]
    flat_params = [p0] + rest1 + rest2

    TB = _choose_tb(B, N)
    grid = (B // TB,)

    in_specs = [pl.BlockSpec((TB, N, C), lambda i: (i, 0, 0))]
    in_specs += [pl.BlockSpec(p.shape, lambda i: (0, 0)) for p in flat_params]

    kernel = functools.partial(_lightda_kernel, len(rest1), len(rest2), TB, N, split)
    out = pl.pallas_call(
        kernel,
        out_shape=jax.ShapeDtypeStruct((B, H1, H2), jnp.float32),
        grid=grid,
        in_specs=in_specs,
        out_specs=pl.BlockSpec((TB, H1, H2), lambda i: (i, 0, 0)),
        compiler_params=pltpu.CompilerParams(dimension_semantics=("parallel",)),
    )(x.astype(param_dtype), *flat_params)
    return out.reshape(B, H1 * H2)            # flatten(1, 2) -- free in the wrapper


# ----------------------------- parameter setup --------------------------------
def init_folded_mlp(key, dims):
    """Deterministic synthetic params; BN (eval mode) folded into (W, b)."""
    params = []
    for i in range(len(dims) - 1):
        key, kw, kg, kb, km, kv = jax.random.split(key, 6)
        cin, cout = dims[i], dims[i + 1]
        w = jax.random.normal(kw, (cout, cin), jnp.float32) / jnp.sqrt(float(cin))
        gamma = 1.0 + 0.1 * jax.random.normal(kg, (cout,), jnp.float32)
        beta = 0.1 * jax.random.normal(kb, (cout,), jnp.float32)
        run_mean = 0.1 * jax.random.normal(km, (cout,), jnp.float32)
        run_var = jnp.abs(jax.random.normal(kv, (cout,), jnp.float32)) + 0.5
        scale = gamma / jnp.sqrt(run_var + 1e-5)
        params.append((w * scale[:, None], beta - run_mean * scale))
    return params, key


# ----------------------------- pure-JAX reference ------------------------------
def reference(x, p1, p2):
    xt = jnp.swapaxes(x, 1, 2)  # (B, C, N)  -- mirrors x.transpose(1, 2)

    def mlp(h, params):
        for w, b in params:
            h = jnp.einsum("oc,bcn->bon", w, h) + b[None, :, None]
            h = jnp.maximum(h, 0.0)
        return h

    x1 = jax.nn.softmax(mlp(xt, p1), axis=-1)      # (B, H1, N)
    x2 = mlp(xt, p2)                               # (B, H2, N)
    out = jnp.einsum("bhn,bgn->bhg", x1, x2)       # bmm(x1, x2^T)
    return out.reshape(out.shape[0], -1)


if __name__ == "__main__":
    def run_case(key, B, N, C_IN, HIDDEN_1, HIDDEN_2):
        key, kx = jax.random.split(key)
        x = jax.random.normal(kx, (B, N, C_IN), jnp.float32)
        p1, key = init_folded_mlp(key, [C_IN] + HIDDEN_1)
        p2, key = init_folded_mlp(key, [C_IN] + HIDDEN_2)

        out = jax.block_until_ready(light_da_forward(x, p1, p2))
        ref = reference(x, p1, p2)

        assert out.shape == (B, HIDDEN_1[-1] * HIDDEN_2[-1]), out.shape
        err = float(jnp.max(jnp.abs(out - ref)))
        assert jnp.allclose(out, ref, atol=1e-3, rtol=1e-3), err
        return key

    key = jax.random.PRNGKey(0)
    # Case 1: B=2 -> TB=1 path (one batch element per grid step).
    key = run_case(key, B=2, N=16, C_IN=8, HIDDEN_1=[32, 16], HIDDEN_2=[32, 8])
    # Case 2: B=4 -> TB=2 path (batch-tiled grid step, merged (TB*N, C) matmuls).
    key = run_case(key, B=4, N=16, C_IN=8, HIDDEN_1=[32, 16], HIDDEN_2=[32, 8])

    print("KERNEL_OK")
</pallas_src>

<mosaic_0001>
module attributes {stable_mosaic.version = 11 : i64} {
  func.func @_lightda_kernel(%arg0: i32, %arg1: memref<1x16x8xf32, #tpu.memory_space<vmem>>, %arg2: memref<9x64xf32, #tpu.memory_space<vmem>>, %arg3: memref<33x16xf32, #tpu.memory_space<vmem>>, %arg4: memref<33x8xf32, #tpu.memory_space<vmem>>, %arg5: memref<1x16x8xf32, #tpu.memory_space<vmem>>) attributes {dimension_semantics = [#tpu.dimension_semantics<parallel>], iteration_bounds = array<i64: 2>, scalar_prefetch = 0 : i64, scratch_operands = 0 : i64, tpu.core_type = #tpu.core_type<tc>, window_params = [{transform_indices = @transform_0, window_bounds = array<i64: 1, 16, 8>}, {pipeline_mode = #tpu.pipeline_mode<synchronous>, transform_indices = @transform_1, window_bounds = array<i64: 9, 64>}, {pipeline_mode = #tpu.pipeline_mode<synchronous>, transform_indices = @transform_2, window_bounds = array<i64: 33, 16>}, {pipeline_mode = #tpu.pipeline_mode<synchronous>, transform_indices = @transform_3, window_bounds = array<i64: 33, 8>}, {transform_indices = @transform_4, window_bounds = array<i64: 1, 16, 8>}]} {
    %c0 = arith.constant 0 : index
    %c0_0 = arith.constant 0 : index
    %c0_1 = arith.constant 0 : index
    %0 = vector.load %arg1[%c0, %c0_0, %c0_1] : memref<1x16x8xf32, #tpu.memory_space<vmem>>, vector<1x16x8xf32>
    %1 = vector.shape_cast %0 : vector<1x16x8xf32> to vector<16x8xf32>
    %c0_2 = arith.constant 0 : index
    %c0_3 = arith.constant 0 : index
    %2 = vector.load %arg2[%c0_2, %c0_3] : memref<9x64xf32, #tpu.memory_space<vmem>>, vector<8x64xf32>
    %c8 = arith.constant 8 : index
    %c0_4 = arith.constant 0 : index
    %3 = vector.load %arg2[%c8, %c0_4] : memref<9x64xf32, #tpu.memory_space<vmem>>, vector<1x64xf32>
    %cst = arith.constant dense<0.000000e+00> : vector<16x64xf32>
    %4 = tpu.matmul %1, %2, %cst {dimension_numbers = #tpu.dot_dimension_numbers<[1], [0], [0], [1], [0, 0, 1, 1], [], []>} : vector<16x8xf32>, vector<8x64xf32>, vector<16x64xf32> -> vector<16x64xf32>
    %5 = vector.broadcast %3 : vector<1x64xf32> to vector<16x64xf32>
    %6 = arith.addf %4, %5 : vector<16x64xf32>
    %cst_5 = arith.constant 0.000000e+00 : f32
    %7 = vector.broadcast %cst_5 : f32 to vector<16x64xf32>
    %8 = arith.maximumf %6, %7 : vector<16x64xf32>
    %9 = vector.extract_strided_slice %8 {offsets = [0, 0], sizes = [16, 32], strides = [1, 1]} : vector<16x64xf32> to vector<16x32xf32>
    %10 = vector.extract_strided_slice %8 {offsets = [0, 32], sizes = [16, 32], strides = [1, 1]} : vector<16x64xf32> to vector<16x32xf32>
    %c0_6 = arith.constant 0 : index
    %c0_7 = arith.constant 0 : index
    %11 = vector.load %arg3[%c0_6, %c0_7] : memref<33x16xf32, #tpu.memory_space<vmem>>, vector<32x16xf32>
    %c32 = arith.constant 32 : index
    %c0_8 = arith.constant 0 : index
    %12 = vector.load %arg3[%c32, %c0_8] : memref<33x16xf32, #tpu.memory_space<vmem>>, vector<1x16xf32>
    %cst_9 = arith.constant dense<0.000000e+00> : vector<16x16xf32>
    %13 = tpu.matmul %9, %11, %cst_9 {dimension_numbers = #tpu.dot_dimension_numbers<[1], [0], [0], [1], [0, 0, 1, 1], [], []>} : vector<16x32xf32>, vector<32x16xf32>, vector<16x16xf32> -> vector<16x16xf32>
    %14 = vector.broadcast %12 : vector<1x16xf32> to vector<16x16xf32>
    %15 = arith.addf %13, %14 : vector<16x16xf32>
    %cst_10 = arith.constant 0.000000e+00 : f32
    %16 = vector.broadcast %cst_10 : f32 to vector<16x16xf32>
    %17 = arith.maximumf %15, %16 : vector<16x16xf32>
    %c0_11 = arith.constant 0 : index
    %c0_12 = arith.constant 0 : index
    %18 = vector.load %arg4[%c0_11, %c0_12] : memref<33x8xf32, #tpu.memory_space<vmem>>, vector<32x8xf32>
    %c32_13 = arith.constant 32 : index
    %c0_14 = arith.constant 0 : index
    %19 = vector.load %arg4[%c32_13, %c0_14] : memref<33x8xf32, #tpu.memory_space<vmem>>, vector<1x8xf32>
    %cst_15 = arith.constant dense<0.000000e+00> : vector<16x8xf32>
    %20 = tpu.matmul %10, %18, %cst_15 {dimension_numbers = #tpu.dot_dimension_numbers<[1], [0], [0], [1], [0, 0, 1, 1], [], []>} : vector<16x32xf32>, vector<32x8xf32>, vector<16x8xf32> -> vector<16x8xf32>
    %21 = vector.broadcast %19 : vector<1x8xf32> to vector<16x8xf32>
    %22 = arith.addf %20, %21 : vector<16x8xf32>
    %cst_16 = arith.constant 0.000000e+00 : f32
    %23 = vector.broadcast %cst_16 : f32 to vector<16x8xf32>
    %24 = arith.maximumf %22, %23 : vector<16x8xf32>
    %cst_17 = arith.constant dense<0xFF800000> : vector<16xf32>
    %25 = vector.multi_reduction <maximumf>, %17, %cst_17 [0] : vector<16x16xf32> to vector<16xf32>
    %26 = vector.shape_cast %25 : vector<16xf32> to vector<1x16xf32>
    %27 = vector.broadcast %26 : vector<1x16xf32> to vector<16x16xf32>
    %28 = arith.subf %17, %27 : vector<16x16xf32>
    %29 = math.exp %28 : vector<16x16xf32>
    %cst_18 = arith.constant dense<0.000000e+00> : vector<16xf32>
    %30 = vector.multi_reduction <add>, %29, %cst_18 [0] : vector<16x16xf32> to vector<16xf32>
    %31 = vector.shape_cast %30 : vector<16xf32> to vector<1x16xf32>
    %32 = tpu.reciprocal %31 {approx = true} : vector<1x16xf32> -> vector<1x16xf32>
    %33 = arith.mulf %31, %32 : vector<1x16xf32>
    %cst_19 = arith.constant 2.000000e+00 : f32
    %34 = vector.broadcast %cst_19 : f32 to vector<1x16xf32>
    %35 = arith.subf %34, %33 : vector<1x16xf32>
    %36 = arith.mulf %32, %35 : vector<1x16xf32>
    %37 = vector.broadcast %36 : vector<1x16xf32> to vector<16x16xf32>
    %38 = arith.mulf %29, %37 : vector<16x16xf32>
    %cst_20 = arith.constant dense<0.000000e+00> : vector<16x8xf32>
    %39 = tpu.matmul %38, %24, %cst_20 {dimension_numbers = #tpu.dot_dimension_numbers<[0], [0], [1], [1], [0, 1, 1, 1], [], []>} : vector<16x16xf32>, vector<16x8xf32>, vector<16x8xf32> -> vector<16x8xf32>
    %c0_21 = arith.constant 0 : index
    %c0_22 = arith.constant 0 : index
    %c0_23 = arith.constant 0 : index
    %40 = vector.load %arg5[%c0_21, %c0_22, %c0_23] : memref<1x16x8xf32, #tpu.memory_space<vmem>>, vector<1x16x8xf32>
    %41 = vector.shape_cast %40 : vector<1x16x8xf32> to vector<16x8xf32>
    %42 = vector.shape_cast %39 : vector<16x8xf32> to vector<1x16x8xf32>
    tpu.vector_store %arg5[%c0_21, %c0_22, %c0_23], %42 {strides = array<i32>} : memref<1x16x8xf32, #tpu.memory_space<vmem>>, vector<1x16x8xf32>,
    return
  }
  func.func @transform_0(%arg0: i32) -> (i32, i32, i32) {
    %c0_i32 = arith.constant 0 : i32
    %c0_i32_0 = arith.constant 0 : i32
    %c0_i32_1 = arith.constant 0 : i32
    return %arg0, %c0_i32, %c0_i32_0 : i32, i32, i32
  }
  func.func @transform_1(%arg0: i32) -> (i32, i32) {
    %c0_i32 = arith.constant 0 : i32
    %c0_i32_0 = arith.constant 0 : i32
    %c0_i32_1 = arith.constant 0 : i32
    return %c0_i32, %c0_i32_0 : i32, i32
  }
  func.func @transform_2(%arg0: i32) -> (i32, i32) {
    %c0_i32 = arith.constant 0 : i32
    %c0_i32_0 = arith.constant 0 : i32
    %c0_i32_1 = arith.constant 0 : i32
    return %c0_i32, %c0_i32_0 : i32, i32
  }
  func.func @transform_3(%arg0: i32) -> (i32, i32) {
    %c0_i32 = arith.constant 0 : i32
    %c0_i32_0 = arith.constant 0 : i32
    %c0_i32_1 = arith.constant 0 : i32
    return %c0_i32, %c0_i32_0 : i32, i32
  }
  func.func @transform_4(%arg0: i32) -> (i32, i32, i32) {
    %c0_i32 = arith.constant 0 : i32
    %c0_i32_0 = arith.constant 0 : i32
    %c0_i32_1 = arith.constant 0 : i32
    return %arg0, %c0_i32, %c0_i32_0 : i32, i32, i32
  }
}

</mosaic_0001>

<llo_original>
// kernel: tpu_custom_call.1
$region0: #{tpu_custom_call.1}
  #allocation0 [shape = 'u32[]', space=smem, size = 0x4, offset = 0x4, fixed_abs, tag = 'smem constant byte address 0x4 - core index']
  #allocation1 [shape = 'u32[144,128]{1,0:T(1,128)}', space=vmem, size = 0x12000, scoped, tag = 'internal scratch']
  %s0 = inlined_call_operand.vmem [shape: f32[2,16,8], index: 0, kind: input, shape index: {}]
  %s1 = inlined_call_operand.vmem [shape: f32[9,64], index: 1, kind: input, shape index: {}]
  %s2 = inlined_call_operand.vmem [shape: f32[33,16], index: 2, kind: input, shape index: {}]
  %s3 = inlined_call_operand.vmem [shape: f32[33,8], index: 3, kind: input, shape index: {}]
  %s4 = inlined_call_operand.vmem [shape: f32[2,16,8], index: 4, kind: output, shape index: {}]
  %s5 = sld [smem:[#allocation0]]
  $region49: #{tpu_custom_call.1} parent=0
    _
  %s7 = ssub.s32 1, %s5
  %s8 = scalar_select 0, %s7, %s5
  loop: start=0, step=1, limit=4
  $region2: #{tpu_custom_call.1} parent=0 // loop_pre_header
    _
  $region3: #{tpu_custom_call.1} parent=0 // loop_header
    %s10 = sphi 0, %s14
    %p11 = scmp.ge.s32.totalorder %s10, 4
    %s20 = sphi 0, %s22
    %s23 = sphi 0, %s20
    %s24 = sphi 0, %s23
    %s40 = sphi 0, %s24
    %s44 = sphi 0, %s44
    %s46 = sphi 0, %s44
    %s47 = sphi 0, %s46
    %s61 = sphi 0, %s47
    %s65 = sphi 0, %s65
    %s67 = sphi 0, %s65
    %s68 = sphi 0, %s67
    %s82 = sphi 0, %s68
    %s86 = sphi 0, %s86
    %s88 = sphi 0, %s86
    %s89 = sphi 0, %s88
    %s103 = sphi 0, %s89
    %s109 = sphi 0, %s111
    %s112 = sphi 0, %s109
    %s113 = sphi 0, %s112
    %s129 = sphi 0, %s113
  $region4: #{tpu_custom_call.1} parent=0 // loop_header_branch
    %13 = sbr.rel (%p11) target = $region8
  $region5: #{tpu_custom_call.1} parent=0 // loop_body
    %s15 = ssub.s32 %s10, 1
    %s16 = ssub.s32 %s10, 2
    %s17 = sadd.s32 %s10, 1
    %s18 = ssub.s32 %s10, %s17
    %p19 = scmp.eq.s32.totalorder %s18, 0
    %s21 = sadd.s32 %s20, 1
    %s22 = scalar_select %p19, %s20, %s21
    %p25 = pneg %p19
    %p26 = scmp.eq.s32.totalorder %s10, 1
    %p27 = por %p25, %p26
    %p28 = scmp.ne.s32.totalorder %s20, %s23
    %p29 = scmp.eq.s32.totalorder %s10, 0
    %p30 = por %p28, %p29
    %p31 = scmp.ne.s32.totalorder %s20, %s23
    %p32 = scmp.eq.s32.totalorder %s15, 1
    %p33 = por %p31, %p32
    %p34 = scmp.ne.s32.totalorder %s23, %s24
    %p35 = scmp.eq.s32.totalorder %s15, 0
    %p36 = por %p34, %p35
    %p37 = scmp.ne.s32.totalorder %s23, %s24
    %p38 = scmp.eq.s32.totalorder %s16, 1
    %p39 = por %p37, %p38
    %p41 = scmp.ne.s32.totalorder %s24, %s40
    %p42 = scmp.eq.s32.totalorder %s16, 0
    %p43 = por %p41, %p42
    %s45 = sadd.s32 %s44, 1
    %p48 = scmp.eq.s32.totalorder %s10, 1
    %p49 = scmp.ne.s32.totalorder %s44, %s46
    %p50 = scmp.eq.s32.totalorder %s10, 0
    %p51 = por %p49, %p50
    %p52 = scmp.ne.s32.totalorder %s44, %s46
    %p53 = scmp.eq.s32.totalorder %s15, 1
    %p54 = por %p52, %p53
    %p55 = scmp.ne.s32.totalorder %s46, %s47
    %p56 = scmp.eq.s32.totalorder %s15, 0
    %p57 = por %p55, %p56
    %p58 = scmp.ne.s32.totalorder %s46, %s47
    %p59 = scmp.eq.s32.totalorder %s16, 1
    %p60 = por %p58, %p59
    %p62 = scmp.ne.s32.totalorder %s47, %s61
    %p63 = scmp.eq.s32.totalorder %s16, 0
    %p64 = por %p62, %p63
    %s66 = sadd.s32 %s65, 1
    %p69 = scmp.eq.s32.totalorder %s10, 1
    %p70 = scmp.ne.s32.totalorder %s65, %s67
    %p71 = scmp.eq.s32.totalorder %s10, 0
    %p72 = por %p70, %p71
    %p73 = scmp.ne.s32.totalorder %s65, %s67
    %p74 = scmp.eq.s32.totalorder %s15, 1
    %p75 = por %p73, %p74
    %p76 = scmp.ne.s32.totalorder %s67, %s68
    %p77 = scmp.eq.s32.totalorder %s15, 0
    %p78 = por %p76, %p77
    %p79 = scmp.ne.s32.totalorder %s67, %s68
    %p80 = scmp.eq.s32.totalorder %s16, 1
    %p81 = por %p79, %p80
    %p83 = scmp.ne.s32.totalorder %s68, %s82
    %p84 = scmp.eq.s32.totalorder %s16, 0
    %p85 = por %p83, %p84
    %s87 = sadd.s32 %s86, 1
    %p90 = scmp.eq.s32.totalorder %s10, 1
    %p91 = scmp.ne.s32.totalorder %s86, %s88
    %p92 = scmp.eq.s32.totalorder %s10, 0
    %p93 = por %p91, %p92
    %p94 = scmp.ne.s32.totalorder %s86, %s88
    %p95 = scmp.eq.s32.totalorder %s15, 1
    %p96 = por %p94, %p95
    %p97 = scmp.ne.s32.totalorder %s88, %s89
    %p98 = scmp.eq.s32.totalorder %s15, 0
    %p99 = por %p97, %p98
    %p100 = scmp.ne.s32.totalorder %s88, %s89
    %p101 = scmp.eq.s32.totalorder %s16, 1
    %p102 = por %p100, %p101
    %p104 = scmp.ne.s32.totalorder %s89, %s103
    %p105 = scmp.eq.s32.totalorder %s16, 0
    %p106 = por %p104, %p105
    %s107 = ssub.s32 %s10, %s17
    %p108 = scmp.eq.s32.totalorder %s107, 0
    %s110 = sadd.s32 %s109, 1
    %s111 = scalar_select %p108, %s109, %s110
    %p114 = pneg %p108
    %p115 = scmp.eq.s32.totalorder %s10, 1
    %p116 = por %p114, %p115
    %p117 = scmp.ne.s32.totalorder %s109, %s112
    %p118 = scmp.eq.s32.totalorder %s10, 0
    %p119 = por %p117, %p118
    %p120 = scmp.ne.s32.totalorder %s109, %s112
    %p121 = scmp.eq.s32.totalorder %s15, 1
    %p122 = por %p120, %p121
    %p123 = scmp.ne.s32.totalorder %s112, %s113
    %p124 = scmp.eq.s32.totalorder %s15, 0
    %p125 = por %p123, %p124
    %p126 = scmp.ne.s32.totalorder %s112, %s113
    %p127 = scmp.eq.s32.totalorder %s16, 1
    %p128 = por %p126, %p127
    %p130 = scmp.ne.s32.totalorder %s113, %s129
    %p131 = scmp.eq.s32.totalorder %s16, 0
    %p132 = por %p130, %p131
    %p133 = scmp.le.s32.totalorder 1, %s10
    %p134 = scmp.lt.s32.totalorder %s10, 3
    %p135 = pnand %p133, %p134
    %p136 = pneg %p135
    // Predicated region
    $region9: #{tpu_custom_call.1} parent=5 // pred_check
      _
    $region10: #{tpu_custom_call.1} parent=5 // pred_check_branch
      %138 = sbr.rel (%p135) target = $region12
    $region11: #{tpu_custom_call.1} parent=5 // pred_region
      %s139 = ssub.s32 %s10, 1
      // Predicated region
      $region13: #{tpu_custom_call.1} parent=11 // pred_check
        %p140 = pneg %p57
      $region14: #{tpu_custom_call.1} parent=11 // pred_check_branch
        %142 = sbr.rel (%p140) target = $region16
      $region15: #{tpu_custom_call.1} parent=11 // pred_region
        _
      $region16: #{tpu_custom_call.1} parent=11 // pred_fallthru
        _
      // Predicated region
      $region17: #{tpu_custom_call.1} parent=11 // pred_check
        %p143 = pneg %p78
      $region18: #{tpu_custom_call.1} parent=11 // pred_check_branch
        %145 = sbr.rel (%p143) target = $region20
      $region19: #{tpu_custom_call.1} parent=11 // pred_region
        _
      $region20: #{tpu_custom_call.1} parent=11 // pred_fallthru
        _
      // Predicated region
      $region21: #{tpu_custom_call.1} parent=11 // pred_check
        %p146 = pneg %p99
      $region22: #{tpu_custom_call.1} parent=11 // pred_check_branch
        %148 = sbr.rel (%p146) target = $region24
      $region23: #{tpu_custom_call.1} parent=11 // pred_region
        _
      $region24: #{tpu_custom_call.1} parent=11 // pred_fallthru
        _
    $region12: #{tpu_custom_call.1} parent=5 // pred_fallthru
      _
    %p149 = scmp.lt.s32.totalorder %s10, 2
    // Predicated region
    $region25: #{tpu_custom_call.1} parent=5 // pred_check
      %p150 = pneg %p149
    $region26: #{tpu_custom_call.1} parent=5 // pred_check_branch
      %152 = sbr.rel (%p150) target = $region28
    $region27: #{tpu_custom_call.1} parent=5 // pred_region
      // Predicated region
      $region29: #{tpu_custom_call.1} parent=27 // pred_check
        %p153 = pneg %p30
      $region30: #{tpu_custom_call.1} parent=27 // pred_check_branch
        %155 = sbr.rel (%p153) target = $region32
      $region31: #{tpu_custom_call.1} parent=27 // pred_region
        %p156 = scmp.lt.s32.totalorder %s10, 1
        %s157 = scalar_select %p156, %s10, 1
        %s158 = smul.addr %s157, 2
        %s159 = smul.addr %s158, 8
        %s160 = scalar_lea.vmem %s0, %s159
      $region32: #{tpu_custom_call.1} parent=27 // pred_fallthru
        _
    $region28: #{tpu_custom_call.1} parent=5 // pred_fallthru
      _
    %p161 = scmp.le.s32.totalorder 1, %s10
    %p162 = scmp.lt.s32.totalorder %s10, 3
    %p163 = pnand %p161, %p162
    %p164 = pneg %p163
    // Predicated region
    $region33: #{tpu_custom_call.1} parent=5 // pred_check
      _
    $region34: #{tpu_custom_call.1} parent=5 // pred_check_branch
      %166 = sbr.rel (%p163) target = $region36
    $region35: #{tpu_custom_call.1} parent=5 // pred_region
      %s167 = ssub.s32 %s10, 1
      %p168 = scmp.lt.s32.totalorder %s15, 1
      %s169 = scalar_select %p168, %s15, 1
      %s170 = smul.addr %s169, 2
      %s171 = smul.addr %s170, 8
      %s172 = scalar_lea.vmem %s0, %s171
      %p173 = pneg %p36
      %p174 = pneg %p33
      %p175 = pneg %p57
      %p176 = pneg %p54
      %p177 = pneg %p78
      %p178 = pneg %p75
      %p179 = pneg %p99
      %p180 = pneg %p96
      %p181 = pneg %p125
      %p182 = pneg %p122
      %p183 = scmp.lt.s32.totalorder %s15, 1
      %s184 = scalar_select %p183, %s15, 1
      %s185 = smul.addr %s184, 2
      %s186 = smul.addr %s185, 8
      %s187 = scalar_lea.vmem %s4, %s186
      %p188 = scmp.lt.s32.totalorder %s15, 1
      %s189 = scalar_select %p188, %s15, 1
      %s190 = smul.addr %s189, 2
      %s191 = smul.addr %s190, 8
      %s192 = scalar_lea.vmem %s0, %s191
      %p193 = scmp.lt.s32.totalorder %s15, 1
      %s194 = scalar_select %p193, %s15, 1
      %s195 = smul.addr %s194, 2
      %s196 = smul.addr %s195, 8
      %s197 = scalar_lea.vmem %s4, %s196
      %v198 = vld [vmem:[%s192] sm:$0xff]
      %v199 = vld [vmem:[%s192 + $0x8] sm:$0xff]
      %v200 = vld [vmem:[%s1] sm:$0xff]
      %v201 = vld [vmem:[%s1 + $0x8] sm:$0x1]
      %v202 = vlaneseq
      %v203 = vshrl.u32 %v202, 7
      %v204 = vsub.s32 0, %v203
      %v205 = vrot.slane %v201, %v204
      %vm206 = vcmask 64512
      %v208 = vsel %vm206, %v198, 0
      %v211 = vsel %vm206, %v199, 0
      %213 = vmatprep.subr.mxu0 0.0
      %214 = vmatpush1.msra.mxu0 %v200
      %215 = vmatprep.subr.mxu0 0.0
      %216 = vmatpush1.msra.mxu0 0.0
      %217 = vmatprep.subr.mxu0 0.0
      %218 = vmatpush1.msra.mxu0 0.0
      %219 = vmatprep.subr.mxu0 0.0
      %220 = vmatpush1.msra.mxu0 0.0
      %221 = vmatprep.subr.mxu0 0.0
      %222 = vmatpush1.msra.mxu0 0.0
      %223 = vmatprep.subr.mxu0 0.0
      %224 = vmatpush1.msra.mxu0 0.0
      %225 = vmatprep.subr.mxu0 0.0
      %226 = vmatpush1.msra.mxu0 0.0
      %227 = vmatprep.subr.mxu0 0.0
      %228 = vmatpush1.msra.mxu0 0.0
      %229 = vmatprep.subr.mxu0 0.0
      %230 = vmatpush1.msra.mxu0 0.0
      %231 = vmatprep.subr.mxu0 0.0
      %232 = vmatpush1.msra.mxu0 0.0
      %233 = vmatprep.subr.mxu0 0.0
      %234 = vmatpush1.msra.mxu0 0.0
      %235 = vmatprep.subr.mxu0 0.0
      %236 = vmatpush1.msra.mxu0 0.0
      %237 = vmatprep.subr.mxu0 0.0
      %238 = vmatpush1.msra.mxu0 0.0
      %239 = vmatprep.subr.mxu0 0.0
      %240 = vmatpush1.msra.mxu0 0.0
      %241 = vmatprep.subr.mxu0 0.0
      %242 = vmatpush1.msra.mxu0 0.0
      %243 = vmatprep.subr.mxu0 0.0
      %244 = vmatpush1.msra.mxu0 0.0
      %245 = vmatprep.subr.mxu0 0.0
      %246 = vmatpush1.msra.mxu0 0.0
      %247 = vmatprep.subr.mxu0 0.0
      %248 = vmatpush1.msra.mxu0 0.0
      %249 = vmatprep.subr.mxu0 0.0
      %250 = vmatpush1.msra.mxu0 0.0
      %251 = vmatprep.subr.mxu0 0.0
      %252 = vmatpush1.msra.mxu0 0.0
      %253 = vmatprep.subr.mxu0 0.0
      %254 = vmatpush1.msra.mxu0 0.0
      %255 = vmatprep.subr.mxu0 0.0
      %256 = vmatpush1.msra.mxu0 0.0
      %257 = vmatprep.subr.mxu0 0.0
      %258 = vmatpush1.msra.mxu0 0.0
      %259 = vmatprep.subr.mxu0 0.0
      %260 = vmatpush1.msra.mxu0 0.0
      %261 = vmatprep.subr.mxu0 0.0
      %262 = vmatpush1.msra.mxu0 0.0
      %263 = vmatprep.subr.mxu0 0.0
      %264 = vmatpush1.msra.mxu0 0.0
      %265 = vmatprep.subr.mxu0 0.0
      %266 = vmatpush1.msra.mxu0 0.0
      %267 = vmatprep.subr.mxu0 0.0
      %268 = vmatpush1.msra.mxu0 0.0
      %269 = vmatprep.subr.mxu0 0.0
      %270 = vmatpush1.msra.mxu0 0.0
      %271 = vmatprep.subr.mxu0 0.0
      %272 = vmatpush1.msra.mxu0 0.0
      %273 = vmatprep.subr.mxu0 0.0
      %274 = vmatpush1.msra.mxu0 0.0
      %275 = vmatprep.subr.mxu0 0.0
      %276 = vmatpush1.msra.mxu0 0.0
      %277 = vmatprep.mubr.f32.mxu0 0.0
      %278 = vmatmul.mubr.f32.gmra.mrb[0].mxu0 %v208
      %v279 = vpop.f32.mrb[0].mxu0
      %v280 = vadd.f32 %v205, %v279
      %v281 = vpop.f32.mrb[0].mxu0
      %282 = vmatprep.mubr.f32.mxu0 0.0
      %283 = vmatmul.mubr.f32.gmra.mrb[0].mxu0 %v211
      %v284 = vpop.f32.mrb[0].mxu0
      %v285 = vadd.f32 %v205, %v284
      %v286 = vpop.f32.mrb[0].mxu0
      %287 = vdwg.mxu0
      %v288 = vmax.f32 %v280, 0.0
      %v289 = vmax.f32 %v285, 0.0
      %v290 = vld [vmem:[%s2] sm:$0xff]
      %v291 = vld [vmem:[%s2 + $0x8] sm:$0xff]
      %v292 = vld [vmem:[%s2 + $0x10] sm:$0xff]
      %v293 = vld [vmem:[%s2 + $0x18] sm:$0xff]
      %v294 = vld [vmem:[%s2 + $0x20] sm:$0x1]
      %v295 = vlaneseq
      %v296 = vshrl.u32 %v295, 7
      %v297 = vsub.s32 0, %v296
      %v298 = vrot.slane %v294, %v297
      %vm299 = vcmask 261120
      %v301 = vsel %vm299, %v288, 0
      %v304 = vsel %vm299, %v289, 0
      %306 = vmatprep.subr.mxu0 0.0
      %307 = vmatpush1.msra.mxu0 %v290
      %308 = vmatprep.subr.mxu0 0.0
      %309 = vmatpush1.msra.mxu0 %v291
      %310 = vmatprep.subr.mxu0 0.0
      %311 = vmatpush1.msra.mxu0 %v292
      %312 = vmatprep.subr.mxu0 0.0
      %313 = vmatpush1.msra.mxu0 %v293
      %314 = vmatprep.subr.mxu0 0.0
      %315 = vmatpush1.msra.mxu0 0.0
      %316 = vmatprep.subr.mxu0 0.0
      %317 = vmatpush1.msra.mxu0 0.0
      %318 = vmatprep.subr.mxu0 0.0
      %319 = vmatpush1.msra.mxu0 0.0
      %320 = vmatprep.subr.mxu0 0.0
      %321 = vmatpush1.msra.mxu0 0.0
      %322 = vmatprep.subr.mxu0 0.0
      %323 = vmatpush1.msra.mxu0 0.0
      %324 = vmatprep.subr.mxu0 0.0
      %325 = vmatpush1.msra.mxu0 0.0
      %326 = vmatprep.subr.mxu0 0.0
      %327 = vmatpush1.msra.mxu0 0.0
      %328 = vmatprep.subr.mxu0 0.0
      %329 = vmatpush1.msra.mxu0 0.0
      %330 = vmatprep.subr.mxu0 0.0
      %331 = vmatpush1.msra.mxu0 0.0
      %332 = vmatprep.subr.mxu0 0.0
      %333 = vmatpush1.msra.mxu0 0.0
      %334 = vmatprep.subr.mxu0 0.0
      %335 = vmatpush1.msra.mxu0 0.0
      %336 = vmatprep.subr.mxu0 0.0
      %337 = vmatpush1.msra.mxu0 0.0
      %338 = vmatprep.subr.mxu0 0.0
      %339 = vmatpush1.msra.mxu0 0.0
      %340 = vmatprep.subr.mxu0 0.0
      %341 = vmatpush1.msra.mxu0 0.0
      %342 = vmatprep.subr.mxu0 0.0
      %343 = vmatpush1.msra.mxu0 0.0
      %344 = vmatprep.subr.mxu0 0.0
      %345 = vmatpush1.msra.mxu0 0.0
      %346 = vmatprep.subr.mxu0 0.0
      %347 = vmatpush1.msra.mxu0 0.0
      %348 = vmatprep.subr.mxu0 0.0
      %349 = vmatpush1.msra.mxu0 0.0
      %350 = vmatprep.subr.mxu0 0.0
      %351 = vmatpush1.msra.mxu0 0.0
      %352 = vmatprep.subr.mxu0 0.0
      %353 = vmatpush1.msra.mxu0 0.0
      %354 = vmatprep.subr.mxu0 0.0
      %355 = vmatpush1.msra.mxu0 0.0
      %356 = vmatprep.subr.mxu0 0.0
      %357 = vmatpush1.msra.mxu0 0.0
      %358 = vmatprep.subr.mxu0 0.0
      %359 = vmatpush1.msra.mxu0 0.0
      %360 = vmatprep.subr.mxu0 0.0
      %361 = vmatpush1.msra.mxu0 0.0
      %362 = vmatprep.subr.mxu0 0.0
      %363 = vmatpush1.msra.mxu0 0.0
      %364 = vmatprep.subr.mxu0 0.0
      %365 = vmatpush1.msra.mxu0 0.0
      %366 = vmatprep.subr.mxu0 0.0
      %367 = vmatpush1.msra.mxu0 0.0
      %368 = vmatprep.subr.mxu0 0.0
      %369 = vmatpush1.msra.mxu0 0.0
      %370 = vmatprep.mubr.f32.mxu0 0.0
      %371 = vmatmul.mubr.f32.gmra.mrb[0].mxu0 %v301
      %v372 = vpop.f32.mrb[0].mxu0
      %v373 = vadd.f32 %v298, %v372
      %v374 = vpop.f32.mrb[0].mxu0
      %375 = vmatprep.mubr.f32.mxu0 0.0
      %376 = vmatmul.mubr.f32.gmra.mrb[0].mxu0 %v304
      %v377 = vpop.f32.mrb[0].mxu0
      %v378 = vadd.f32 %v298, %v377
      %v379 = vpop.f32.mrb[0].mxu0
      %380 = vdwg.mxu0
      %v381 = vmax.f32 %v373, 0.0
      %v382 = vmax.f32 %v378, 0.0
      %v383 = vld [vmem:[%s3] sm:$0xff]
      %v384 = vld [vmem:[%s3 + $0x8] sm:$0xff]
      %v385 = vld [vmem:[%s3 + $0x10] sm:$0xff]
      %v386 = vld [vmem:[%s3 + $0x18] sm:$0xff]
      %v387 = vld [vmem:[%s3 + $0x20] sm:$0x1]
      %v388 = vlaneseq
      %v389 = vshrl.u32 %v388, 7
      %v390 = vsub.s32 0, %v389
      %v391 = vrot.slane %v387, %v390
      %392 = vrot.lane.b32.xlu0 %v288, 96
      %v393 = vpop.permute.xlu0 %392
      %394 = vrot.lane.b32.xlu0 %v289, 96
      %v395 = vpop.permute.xlu0 %394
      %v396 = vsel %vm299, %v393, 0
      %v398 = vsel %vm299, %v395, 0
      %400 = vmatprep.subr.mxu0 0.0
      %401 = vmatpush1.msra.mxu0 %v383
      %402 = vmatprep.subr.mxu0 0.0
      %403 = vmatpush1.msra.mxu0 %v384
      %404 = vmatprep.subr.mxu0 0.0
      %405 = vmatpush1.msra.mxu0 %v385
      %406 = vmatprep.subr.mxu0 0.0
      %407 = vmatpush1.msra.mxu0 %v386
      %408 = vmatprep.subr.mxu0 0.0
      %409 = vmatpush1.msra.mxu0 0.0
      %410 = vmatprep.subr.mxu0 0.0
      %411 = vmatpush1.msra.mxu0 0.0
      %412 = vmatprep.subr.mxu0 0.0
      %413 = vmatpush1.msra.mxu0 0.0
      %414 = vmatprep.subr.mxu0 0.0
      %415 = vmatpush1.msra.mxu0 0.0
      %416 = vmatprep.subr.mxu0 0.0
      %417 = vmatpush1.msra.mxu0 0.0
      %418 = vmatprep.subr.mxu0 0.0
      %419 = vmatpush1.msra.mxu0 0.0
      %420 = vmatprep.subr.mxu0 0.0
      %421 = vmatpush1.msra.mxu0 0.0
      %422 = vmatprep.subr.mxu0 0.0
      %423 = vmatpush1.msra.mxu0 0.0
      %424 = vmatprep.subr.mxu0 0.0
      %425 = vmatpush1.msra.mxu0 0.0
      %426 = vmatprep.subr.mxu0 0.0
      %427 = vmatpush1.msra.mxu0 0.0
      %428 = vmatprep.subr.mxu0 0.0
      %429 = vmatpush1.msra.mxu0 0.0
      %430 = vmatprep.subr.mxu0 0.0
      %431 = vmatpush1.msra.mxu0 0.0
      %432 = vmatprep.subr.mxu0 0.0
      %433 = vmatpush1.msra.mxu0 0.0
      %434 = vmatprep.subr.mxu0 0.0
      %435 = vmatpush1.msra.mxu0 0.0
      %436 = vmatprep.subr.mxu0 0.0
      %437 = vmatpush1.msra.mxu0 0.0
      %438 = vmatprep.subr.mxu0 0.0
      %439 = vmatpush1.msra.mxu0 0.0
      %440 = vmatprep.subr.mxu0 0.0
      %441 = vmatpush1.msra.mxu0 0.0
      %442 = vmatprep.subr.mxu0 0.0
      %443 = vmatpush1.msra.mxu0 0.0
      %444 = vmatprep.subr.mxu0 0.0
      %445 = vmatpush1.msra.mxu0 0.0
      %446 = vmatprep.subr.mxu0 0.0
      %447 = vmatpush1.msra.mxu0 0.0
      %448 = vmatprep.subr.mxu0 0.0
      %449 = vmatpush1.msra.mxu0 0.0
      %450 = vmatprep.subr.mxu0 0.0
      %451 = vmatpush1.msra.mxu0 0.0
      %452 = vmatprep.subr.mxu0 0.0
      %453 = vmatpush1.msra.mxu0 0.0
      %454 = vmatprep.subr.mxu0 0.0
      %455 = vmatpush1.msra.mxu0 0.0
      %456 = vmatprep.subr.mxu0 0.0
      %457 = vmatpush1.msra.mxu0 0.0
      %458 = vmatprep.subr.mxu0 0.0
      %459 = vmatpush1.msra.mxu0 0.0
      %460 = vmatprep.subr.mxu0 0.0
      %461 = vmatpush1.msra.mxu0 0.0
      %462 = vmatprep.subr.mxu0 0.0
      %463 = vmatpush1.msra.mxu0 0.0
      %464 = vmatprep.mubr.f32.mxu0 0.0
      %465 = vmatmul.mubr.f32.gmra.mrb[0].mxu0 %v396
      %v466 = vpop.f32.mrb[0].mxu0
      %v467 = vadd.f32 %v391, %v466
      %v468 = vpop.f32.mrb[0].mxu0
      %469 = vmatprep.mubr.f32.mxu0 0.0
      %470 = vmatmul.mubr.f32.gmra.mrb[0].mxu0 %v398
      %v471 = vpop.f32.mrb[0].mxu0
      %v472 = vadd.f32 %v391, %v471
      %v473 = vpop.f32.mrb[0].mxu0
      %474 = vdwg.mxu0
      %v475 = vmax.f32 %v467, 0.0
      %v476 = vmax.f32 %v472, 0.0
      %vm477 = vcmask 130048
      %v478 = vsel %vm477, %v381, -inf
      %v479 = vsel %vm477, %v382, -inf
      %v480 = vmax.f32 %v478, %v479
      %v481 = vrot.slane %v480, 4
      %v482 = vmax.f32 %v480, %v481
      %v483 = vrot.slane %v482, 2
      %v484 = vmax.f32 %v482, %v483
      %v485 = vrot.slane %v484, 1
      %v486 = vmax.f32 %v484, %v485
      %v487 = vsub.f32 %v381, %v486
      %v488 = vsub.f32 %v382, %v486
      %v489 = vmul.f32 %v487, 1.442695
      %v490 = vpow.pop %v489
      %v491 = vmul.f32 %v488, 1.442695
      %v492 = vpow.pop %v491
      %v493 = vsel %vm477, %v490, 0.0
      %v494 = vsel %vm477, %v492, 0.0
      %v495 = vadd.f32 %v493, %v494
      %v496 = vrot.slane %v495, 4
      %v497 = vadd.f32 %v495, %v496
      %v498 = vrot.slane %v497, 2
      %v499 = vadd.f32 %v497, %v498
      %v500 = vrot.slane %v499, 1
      %v501 = vadd.f32 %v499, %v500
      %v502 = vrcp.pop %v501
      %v503 = vmul.f32 %v501, %v502
      %v504 = vsub.f32 2.0, %v503
      %v505 = vmul.f32 %v502, %v504
      %v506 = vmul.f32 %v490, %v505
      %v507 = vmul.f32 %v492, %v505
      %508 = vxpose.xlu0.b32.start [1/16] %v506, 128
      %509 = vxpose.xlu0.b32.cont [2/16] %v507, 128
      %510 = vxpose.xlu0.b32.cont [3/16] 0.0, 128
      %511 = vxpose.xlu0.b32.cont [4/16] 0.0, 128
      %512 = vxpose.xlu0.b32.cont [5/16] 0.0, 128
      %513 = vxpose.xlu0.b32.cont [6/16] 0.0, 128
      %514 = vxpose.xlu0.b32.cont [7/16] 0.0, 128
      %515 = vxpose.xlu0.b32.cont [8/16] 0.0, 128
      %516 = vxpose.xlu0.b32.cont [9/16] 0.0, 128
      %517 = vxpose.xlu0.b32.cont [10/16] 0.0, 128
      %518 = vxpose.xlu0.b32.cont [11/16] 0.0, 128
      %519 = vxpose.xlu0.b32.cont [12/16] 0.0, 128
      %520 = vxpose.xlu0.b32.cont [13/16] 0.0, 128
      %521 = vxpose.xlu0.b32.cont [14/16] 0.0, 128
      %522 = vxpose.xlu0.b32.cont [15/16] 0.0, 128
      %523 = vxpose.xlu0.b32.end [16/16] 0.0, 128
      %v524 = vpop.trf.xlu0
      %v525 = vpop.trf.xlu0
      %v526 = vpop.trf.xlu0
      %v527 = vpop.trf.xlu0
      %v528 = vpop.trf.xlu0
      %v529 = vpop.trf.xlu0
      %v530 = vpop.trf.xlu0
      %v531 = vpop.trf.xlu0
      %v532 = vpop.trf.xlu0
      %v533 = vpop.trf.xlu0
      %v534 = vpop.trf.xlu0
      %v535 = vpop.trf.xlu0
      %v536 = vpop.trf.xlu0
      %v537 = vpop.trf.xlu0
      %v538 = vpop.trf.xlu0
      %v539 = vpop.trf.xlu0
      %v541 = vsel %vm477, %v524, 0
      %v544 = vsel %vm477, %v525, 0
      %546 = vmatprep.subr.mxu0 0.0
      %547 = vmatpush1.msra.mxu0 %v475
      %548 = vmatprep.subr.mxu0 0.0
      %549 = vmatpush1.msra.mxu0 %v476
      %550 = vmatprep.subr.mxu0 0.0
      %551 = vmatpush1.msra.mxu0 0.0
      %552 = vmatprep.subr.mxu0 0.0
      %553 = vmatpush1.msra.mxu0 0.0
      %554 = vmatprep.subr.mxu0 0.0
      %555 = vmatpush1.msra.mxu0 0.0
      %556 = vmatprep.subr.mxu0 0.0
      %557 = vmatpush1.msra.mxu0 0.0
      %558 = vmatprep.subr.mxu0 0.0
      %559 = vmatpush1.msra.mxu0 0.0
      %560 = vmatprep.subr.mxu0 0.0
      %561 = vmatpush1.msra.mxu0 0.0
      %562 = vmatprep.subr.mxu0 0.0
      %563 = vmatpush1.msra.mxu0 0.0
      %564 = vmatprep.subr.mxu0 0.0
      %565 = vmatpush1.msra.mxu0 0.0
      %566 = vmatprep.subr.mxu0 0.0
      %567 = vmatpush1.msra.mxu0 0.0
      %568 = vmatprep.subr.mxu0 0.0
      %569 = vmatpush1.msra.mxu0 0.0
      %570 = vmatprep.subr.mxu0 0.0
      %571 = vmatpush1.msra.mxu0 0.0
      %572 = vmatprep.subr.mxu0 0.0
      %573 = vmatpush1.msra.mxu0 0.0
      %574 = vmatprep.subr.mxu0 0.0
      %575 = vmatpush1.msra.mxu0 0.0
      %576 = vmatprep.subr.mxu0 0.0
      %577 = vmatpush1.msra.mxu0 0.0
      %578 = vmatprep.subr.mxu0 0.0
      %579 = vmatpush1.msra.mxu0 0.0
      %580 = vmatprep.subr.mxu0 0.0
      %581 = vmatpush1.msra.mxu0 0.0
      %582 = vmatprep.subr.mxu0 0.0
      %583 = vmatpush1.msra.mxu0 0.0
      %584 = vmatprep.subr.mxu0 0.0
      %585 = vmatpush1.msra.mxu0 0.0
      %586 = vmatprep.subr.mxu0 0.0
      %587 = vmatpush1.msra.mxu0 0.0
      %588 = vmatprep.subr.mxu0 0.0
      %589 = vmatpush1.msra.mxu0 0.0
      %590 = vmatprep.subr.mxu0 0.0
      %591 = vmatpush1.msra.mxu0 0.0
      %592 = vmatprep.subr.mxu0 0.0
      %593 = vmatpush1.msra.mxu0 0.0
      %594 = vmatprep.subr.mxu0 0.0
      %595 = vmatpush1.msra.mxu0 0.0
      %596 = vmatprep.subr.mxu0 0.0
      %597 = vmatpush1.msra.mxu0 0.0
      %598 = vmatprep.subr.mxu0 0.0
      %599 = vmatpush1.msra.mxu0 0.0
      %600 = vmatprep.subr.mxu0 0.0
      %601 = vmatpush1.msra.mxu0 0.0
      %602 = vmatprep.subr.mxu0 0.0
      %603 = vmatpush1.msra.mxu0 0.0
      %604 = vmatprep.subr.mxu0 0.0
      %605 = vmatpush1.msra.mxu0 0.0
      %606 = vmatprep.subr.mxu0 0.0
      %607 = vmatpush1.msra.mxu0 0.0
      %608 = vmatprep.subr.mxu0 0.0
      %609 = vmatpush1.msra.mxu0 0.0
      %610 = vmatprep.mubr.f32.mxu0 0.0
      %611 = vmatmul.mubr.f32.gmra.mrb[0].mxu0 %v541
      %v612 = vpop.f32.mrb[0].mxu0
      %v613 = vadd.f32 0.0, %v612
      %v614 = vpop.f32.mrb[0].mxu0
      %615 = vmatprep.mubr.f32.mxu0 0.0
      %616 = vmatmul.mubr.f32.gmra.mrb[0].mxu0 %v544
      %v617 = vpop.f32.mrb[0].mxu0
      %v618 = vadd.f32 0.0, %v617
      %v619 = vpop.f32.mrb[0].mxu0
      %620 = vdwg.mxu0
      %621 = vst.msk [vmem:[%s197] sm:$0xff] %vm206, %v613
      %622 = vst.msk [vmem:[%s197 + $0x8] sm:$0xff] %vm206, %v618
      %p623 = scmp.lt.s32.totalorder %s15, 1
      %s624 = scalar_select %p623, %s15, 1
      %s625 = smul.addr %s624, 2
      %s626 = smul.addr %s625, 8
      %s627 = scalar_lea.vmem %s4, %s626
      // Predicated region
      $region37: #{tpu_custom_call.1} parent=35 // pred_check
        %p628 = pneg %p122
      $region38: #{tpu_custom_call.1} parent=35 // pred_check_branch
        %630 = sbr.rel (%p628) target = $region40
      $region39: #{tpu_custom_call.1} parent=35 // pred_region
        _
      $region40: #{tpu_custom_call.1} parent=35 // pred_fallthru
        _
    $region36: #{tpu_custom_call.1} parent=5 // pred_fallthru
      _
    %p631 = scmp.le.s32.totalorder 2, %s10
    // Predicated region
    $region41: #{tpu_custom_call.1} parent=5 // pred_check
      %p632 = pneg %p631
    $region42: #{tpu_custom_call.1} parent=5 // pred_check_branch
      %634 = sbr.rel (%p632) target = $region44
    $region43: #{tpu_custom_call.1} parent=5 // pred_region
      %s635 = ssub.s32 %s10, 2
      // Predicated region
      $region45: #{tpu_custom_call.1} parent=43 // pred_check
        %p636 = pneg %p128
      $region46: #{tpu_custom_call.1} parent=43 // pred_check_branch
        %638 = sbr.rel (%p636) target = $region48
      $region47: #{tpu_custom_call.1} parent=43 // pred_region
        %p639 = scmp.lt.s32.totalorder %s16, 1
        %s640 = scalar_select %p639, %s16, 1
        %s641 = smul.addr %s640, 2
        %s642 = smul.addr %s641, 8
        %s643 = scalar_lea.vmem %s4, %s642
      $region48: #{tpu_custom_call.1} parent=43 // pred_fallthru
        _
    $region44: #{tpu_custom_call.1} parent=5 // pred_fallthru
      _
  $region6: #{tpu_custom_call.1} parent=0 // loop_footer
    %s14 = sadd.s32 1, %s10
  $region7: #{tpu_custom_call.1} parent=0 // loop_footer_branch
    %9 = sbr.rel target = $region3
  $region8: #{tpu_custom_call.1} parent=0 // loop_exit
    _

</llo_original>
